<compile_context>
chip_gen: v5e
topology: v5e:2x2
jax: 0.10.0
libtpu: 0.0.40
codegen_flags: <defaults>
</compile_context>

<pallas_src>
import jax
import jax.numpy as jnp
from jax.experimental import pallas as pl
from jax.experimental.pallas import tpu as pltpu


def _mlp_kernel(xT_ref, w1T_ref, b1_ref, w2_ref, b2_ref, out_ref):
    # First layer: z^T = W1 @ x^T -> (H, TM); f32 accumulation on the MXU.
    z = jnp.dot(w1T_ref[...], xT_ref[...], preferred_element_type=jnp.float32)
    z = z + b1_ref[...]                                 # (H, TM) + (H, 1)
    # Logistic units: exp on the EUP, approximate reciprocal on the EUP.
    h = pl.reciprocal(1.0 + jnp.exp(-z), approx=True)   # (H, TM), f32
    # Output layer (O == 1): VPU multiply + XLU sublane reduce, no MXU pass.
    o = jnp.sum(h * w2_ref[...], axis=0, keepdims=True)  # (1, TM)
    o = o + b2_ref[...]                                  # (1, TM) + (1, 1)
    out_ref[...] = o.astype(out_ref.dtype)               # lane-dense store


def mlp_forward(x, w1T, b1, w2, b2, *, tm=128, use_bf16_mxu=True):
    """x: (B, F); w1T: (H, F); b1: (H, 1); w2: (H, 1); b2: (1, 1) -> (B, 1)."""
    B, F = x.shape
    H = w1T.shape[0]
    O = w2.shape[1]
    assert O == 1, "kernel specialises the O=1 output unit of the module"
    # TODO(synk): general O>1 would need an (H, O) MXU matmul for the 2nd layer.

    nt = pl.cdiv(B, tm)
    b_padded = nt * tm
    if b_padded != B:
        x = jnp.pad(x, ((0, b_padded - B), (0, 0)))
    # Put the batch dimension on lanes inside the kernel.
    xT = x.T                                             # (F, B_padded)
    if use_bf16_mxu:
        xT = xT.astype(jnp.bfloat16)                     # halves x DMA bytes
        w1T = w1T.astype(jnp.bfloat16)

    out_slab = pl.pallas_call(
        _mlp_kernel,
        out_shape=jax.ShapeDtypeStruct((1, b_padded), jnp.float32),
        grid=(nt,),
        in_specs=[
            pl.BlockSpec((F, tm), lambda i: (0, i)),     # x tile (pipelined)
            pl.BlockSpec((H, F), lambda i: (0, 0)),      # W1^T (VMEM resident)
            pl.BlockSpec((H, 1), lambda i: (0, 0)),      # b1
            pl.BlockSpec((H, O), lambda i: (0, 0)),      # w2 column
            pl.BlockSpec((1, O), lambda i: (0, 0)),      # b2
        ],
        out_specs=pl.BlockSpec((1, tm), lambda i: (0, i)),
        compiler_params=pltpu.CompilerParams(
            dimension_semantics=("parallel",),
            vmem_limit_bytes=32 * 1024 * 1024,
        ),
    )(xT, w1T, b1, w2, b2)

    return out_slab[0, :B].reshape(B, O)


def init_params(key, input_features, hidden_units, output_units=1):
    """torch.nn.Linear-style init U(-1/sqrt(fan_in), 1/sqrt(fan_in)), stored in
    the kernel's layout: W1^T (H, F), b1 (H, 1), W2 (H, O), b2 (1, O)."""
    k1, k2, k3, k4 = jax.random.split(key, 4)
    bound1 = 1.0 / jnp.sqrt(input_features)
    bound2 = 1.0 / jnp.sqrt(hidden_units)
    w1T = jax.random.uniform(k1, (hidden_units, input_features), jnp.float32,
                             -bound1, bound1)
    b1 = jax.random.uniform(k2, (hidden_units, 1), jnp.float32, -bound1, bound1)
    w2 = jax.random.uniform(k3, (hidden_units, output_units), jnp.float32,
                            -bound2, bound2)
    b2 = jax.random.uniform(k4, (1, output_units), jnp.float32, -bound2, bound2)
    return w1T, b1, w2, b2


def mlp_reference(x, w1T, b1, w2, b2):
    z = x @ w1T.T + b1.T          # (B, H)
    h = jax.nn.sigmoid(z)
    return h @ w2 + b2            # (B, O)


if __name__ == "__main__":
    key = jax.random.PRNGKey(0)
    batch = 256            # two 128-row tiles -> exercises pipelining/parallel axis
    input_features = 16
    hidden_units = 32
    output_units = 1

    kx, kp = jax.random.split(key)
    x = jax.random.normal(kx, (batch, input_features), jnp.float32)
    w1T, b1, w2, b2 = init_params(kp, input_features, hidden_units, output_units)

    ref = mlp_reference(x, w1T, b1, w2, b2)

    # Full-f32 MXU path (tight check; approx EUP reciprocal ~1e-4 rel err).
    out_f32 = jax.block_until_ready(
        mlp_forward(x, w1T, b1, w2, b2, use_bf16_mxu=False))
    assert out_f32.shape == (batch, output_units)
    assert jnp.allclose(out_f32, ref, atol=2e-3, rtol=2e-3), "f32 mismatch"

    # bf16 MXU-input path (default; v6e/v7x-friendly) -> looser tolerance.
    out_bf16 = jax.block_until_ready(
        mlp_forward(x, w1T, b1, w2, b2, use_bf16_mxu=True))
    assert out_bf16.shape == (batch, output_units)
    assert jnp.allclose(out_bf16, ref, atol=3e-2, rtol=3e-2), "bf16 mismatch"

    print("KERNEL_OK")
</pallas_src>

<mosaic_0001>
module attributes {stable_mosaic.version = 11 : i64} {
  func.func @_mlp_kernel(%arg0: i32, %arg1: memref<16x128xf32, #tpu.memory_space<vmem>>, %arg2: memref<32x16xf32, #tpu.memory_space<vmem>>, %arg3: memref<32x1xf32, #tpu.memory_space<vmem>>, %arg4: memref<32x1xf32, #tpu.memory_space<vmem>>, %arg5: memref<1x1xf32, #tpu.memory_space<vmem>>, %arg6: memref<1x128xf32, #tpu.memory_space<vmem>>) attributes {dimension_semantics = [#tpu.dimension_semantics<parallel>], iteration_bounds = array<i64: 2>, scalar_prefetch = 0 : i64, scratch_operands = 0 : i64, tpu.core_type = #tpu.core_type<tc>, window_params = [{transform_indices = @transform_0, window_bounds = array<i64: 16, 128>}, {pipeline_mode = #tpu.pipeline_mode<synchronous>, transform_indices = @transform_1, window_bounds = array<i64: 32, 16>}, {pipeline_mode = #tpu.pipeline_mode<synchronous>, transform_indices = @transform_2, window_bounds = array<i64: 32, 1>}, {pipeline_mode = #tpu.pipeline_mode<synchronous>, transform_indices = @transform_3, window_bounds = array<i64: 32, 1>}, {pipeline_mode = #tpu.pipeline_mode<synchronous>, transform_indices = @transform_4, window_bounds = array<i64: 1, 1>}, {transform_indices = @transform_5, window_bounds = array<i64: 1, 128>}]} {
    %c0 = arith.constant 0 : index
    %c0_0 = arith.constant 0 : index
    %0 = vector.load %arg2[%c0, %c0_0] : memref<32x16xf32, #tpu.memory_space<vmem>>, vector<32x16xf32>
    %c0_1 = arith.constant 0 : index
    %c0_2 = arith.constant 0 : index
    %1 = vector.load %arg1[%c0_1, %c0_2] : memref<16x128xf32, #tpu.memory_space<vmem>>, vector<16x128xf32>
    %cst = arith.constant dense<0.000000e+00> : vector<32x128xf32>
    %2 = tpu.matmul %0, %1, %cst {dimension_numbers = #tpu.dot_dimension_numbers<[1], [0], [0], [1], [0, 0, 1, 1], [], []>} : vector<32x16xf32>, vector<16x128xf32>, vector<32x128xf32> -> vector<32x128xf32>
    %c0_3 = arith.constant 0 : index
    %c0_4 = arith.constant 0 : index
    %3 = vector.load %arg3[%c0_3, %c0_4] : memref<32x1xf32, #tpu.memory_space<vmem>>, vector<32x1xf32>
    %4 = vector.broadcast %3 : vector<32x1xf32> to vector<32x128xf32>
    %5 = arith.addf %2, %4 : vector<32x128xf32>
    %cst_5 = arith.constant 0.000000e+00 : f32
    %6 = vector.broadcast %cst_5 : f32 to vector<32x128xf32>
    %7 = arith.subf %6, %5 : vector<32x128xf32>
    %8 = math.exp %7 : vector<32x128xf32>
    %cst_6 = arith.constant 1.000000e+00 : f32
    %9 = vector.broadcast %cst_6 : f32 to vector<32x128xf32>
    %10 = arith.addf %9, %8 : vector<32x128xf32>
    %11 = tpu.reciprocal %10 {approx = true} : vector<32x128xf32> -> vector<32x128xf32>
    %c0_7 = arith.constant 0 : index
    %c0_8 = arith.constant 0 : index
    %12 = vector.load %arg4[%c0_7, %c0_8] : memref<32x1xf32, #tpu.memory_space<vmem>>, vector<32x1xf32>
    %13 = vector.broadcast %12 : vector<32x1xf32> to vector<32x128xf32>
    %14 = arith.mulf %11, %13 : vector<32x128xf32>
    %cst_9 = arith.constant dense<0.000000e+00> : vector<128xf32>
    %15 = vector.multi_reduction <add>, %14, %cst_9 [0] : vector<32x128xf32> to vector<128xf32>
    %16 = vector.shape_cast %15 : vector<128xf32> to vector<1x128xf32>
    %c0_10 = arith.constant 0 : index
    %c0_11 = arith.constant 0 : index
    %17 = vector.load %arg5[%c0_10, %c0_11] : memref<1x1xf32, #tpu.memory_space<vmem>>, vector<1x1xf32>
    %18 = vector.broadcast %17 : vector<1x1xf32> to vector<1x128xf32>
    %19 = arith.addf %16, %18 : vector<1x128xf32>
    %c0_12 = arith.constant 0 : index
    %c0_13 = arith.constant 0 : index
    %20 = vector.load %arg6[%c0_12, %c0_13] : memref<1x128xf32, #tpu.memory_space<vmem>>, vector<1x128xf32>
    tpu.vector_store %arg6[%c0_12, %c0_13], %19 {strides = array<i32>} : memref<1x128xf32, #tpu.memory_space<vmem>>, vector<1x128xf32>,
    return
  }
  func.func @transform_0(%arg0: i32) -> (i32, i32) {
    %c0_i32 = arith.constant 0 : i32
    %c0_i32_0 = arith.constant 0 : i32
    return %c0_i32, %arg0 : i32, i32
  }
  func.func @transform_1(%arg0: i32) -> (i32, i32) {
    %c0_i32 = arith.constant 0 : i32
    %c0_i32_0 = arith.constant 0 : i32
    %c0_i32_1 = arith.constant 0 : i32
    return %c0_i32, %c0_i32_0 : i32, i32
  }
  func.func @transform_2(%arg0: i32) -> (i32, i32) {
    %c0_i32 = arith.constant 0 : i32
    %c0_i32_0 = arith.constant 0 : i32
    %c0_i32_1 = arith.constant 0 : i32
    return %c0_i32, %c0_i32_0 : i32, i32
  }
  func.func @transform_3(%arg0: i32) -> (i32, i32) {
    %c0_i32 = arith.constant 0 : i32
    %c0_i32_0 = arith.constant 0 : i32
    %c0_i32_1 = arith.constant 0 : i32
    return %c0_i32, %c0_i32_0 : i32, i32
  }
  func.func @transform_4(%arg0: i32) -> (i32, i32) {
    %c0_i32 = arith.constant 0 : i32
    %c0_i32_0 = arith.constant 0 : i32
    %c0_i32_1 = arith.constant 0 : i32
    return %c0_i32, %c0_i32_0 : i32, i32
  }
  func.func @transform_5(%arg0: i32) -> (i32, i32) {
    %c0_i32 = arith.constant 0 : i32
    %c0_i32_0 = arith.constant 0 : i32
    return %c0_i32, %arg0 : i32, i32
  }
}

</mosaic_0001>

<llo_original>
// kernel: tpu_custom_call.1
$region0: #{tpu_custom_call.1}
  #allocation0 [shape = 'u32[]', space=smem, size = 0x4, offset = 0x4, fixed_abs, tag = 'smem constant byte address 0x4 - core index']
  #allocation1 [shape = 'u32[72,128]{1,0:T(1,128)}', space=vmem, size = 0x9000, scoped, tag = 'internal scratch']
  #allocation2 [shape = 'f32[1,1]{1,0:T(1,128)S(1)}', space=vmem, size = 0x200, scoped, tag = 'scoped memory for tpu_custom_call.1']
  %s0 = inlined_call_operand.vmem [shape: f32[16,256], index: 0, kind: input, shape index: {}]
  %s1 = inlined_call_operand.vmem [shape: f32[32,16], index: 1, kind: input, shape index: {}]
  %s2 = inlined_call_operand.vmem [shape: f32[32,1], index: 2, kind: input, shape index: {}]
  %s3 = inlined_call_operand.vmem [shape: f32[32,1], index: 3, kind: input, shape index: {}]
  %s4 = inlined_call_operand.<no memory space> [shape: f32[1,1], index: 4, kind: input, shape index: {}]
  %s5 = inlined_call_operand.hbm [shape: f32[1,256], index: 5, kind: output, shape index: {}]
  %s6 = sld [smem:[#allocation0]]
  $region91: #{tpu_custom_call.1} parent=0
    _
  %s8 = ssub.s32 1, %s6
  %s9 = scalar_select 0, %s8, %s6
  %v10 = vstv %s4
  %11 = vst [vmem:[#allocation2] sm:$0x1] %v10
  $region1: #{tpu_custom_call.1} parent=0
    #allocation3 [shape = 'u8[16384]{0}', space=vmem, size = 0x4000, scoped, tag = 'input window, operand 0']
    #allocation4 [shape = 'u8[1024]{0}', space=vmem, size = 0x400, scoped, tag = 'output window, operand 0']
    #allocation5 [shape = 's32[2]{0}', space=sflag, size = 0x8, scoped, tag = 'scoped memory for tpu_custom_call.1']
    %12 = vsyncpa [#allocation5], 0
    %s13 = scalar_lea.sflag [#allocation5], 1
    %14 = vsyncpa %s13, 0
    loop: start=0, step=1, limit=4
    $region2: #{tpu_custom_call.1} parent=1 // loop_pre_header
      _
    $region3: #{tpu_custom_call.1} parent=1 // loop_header
      %s16 = sphi 0, %s20
      %p17 = scmp.ge.s32.totalorder %s16, 4
      %s26 = sphi 0, %s28
      %s29 = sphi 0, %s26
      %s30 = sphi 0, %s29
      %s46 = sphi 0, %s30
      %s50 = sphi 0, %s50
      %s52 = sphi 0, %s50
      %s53 = sphi 0, %s52
      %s67 = sphi 0, %s53
      %s71 = sphi 0, %s71
      %s73 = sphi 0, %s71
      %s74 = sphi 0, %s73
      %s88 = sphi 0, %s74
      %s92 = sphi 0, %s92
      %s94 = sphi 0, %s92
      %s95 = sphi 0, %s94
      %s109 = sphi 0, %s95
      %s113 = sphi 0, %s113
      %s115 = sphi 0, %s113
      %s116 = sphi 0, %s115
      %s130 = sphi 0, %s116
      %s136 = sphi 0, %s138
      %s139 = sphi 0, %s136
      %s140 = sphi 0, %s139
      %s156 = sphi 0, %s140
    $region4: #{tpu_custom_call.1} parent=1 // loop_header_branch
      %19 = sbr.rel (%p17) target = $region8
    $region5: #{tpu_custom_call.1} parent=1 // loop_body
      %s21 = ssub.s32 %s16, 1
      %s22 = ssub.s32 %s16, 2
      %s23 = sadd.s32 %s16, 1
      %s24 = ssub.s32 %s16, %s23
      %p25 = scmp.eq.s32.totalorder %s24, 0
      %s27 = sadd.s32 %s26, 1
      %s28 = scalar_select %p25, %s26, %s27
      %p31 = pneg %p25
      %p32 = scmp.eq.s32.totalorder %s16, 1
      %p33 = por %p31, %p32
      %p34 = scmp.ne.s32.totalorder %s26, %s29
      %p35 = scmp.eq.s32.totalorder %s16, 0
      %p36 = por %p34, %p35
      %p37 = scmp.ne.s32.totalorder %s26, %s29
      %p38 = scmp.eq.s32.totalorder %s21, 1
      %p39 = por %p37, %p38
      %p40 = scmp.ne.s32.totalorder %s29, %s30
      %p41 = scmp.eq.s32.totalorder %s21, 0
      %p42 = por %p40, %p41
      %p43 = scmp.ne.s32.totalorder %s29, %s30
      %p44 = scmp.eq.s32.totalorder %s22, 1
      %p45 = por %p43, %p44
      %p47 = scmp.ne.s32.totalorder %s30, %s46
      %p48 = scmp.eq.s32.totalorder %s22, 0
      %p49 = por %p47, %p48
      %s51 = sadd.s32 %s50, 1
      %p54 = scmp.eq.s32.totalorder %s16, 1
      %p55 = scmp.ne.s32.totalorder %s50, %s52
      %p56 = scmp.eq.s32.totalorder %s16, 0
      %p57 = por %p55, %p56
      %p58 = scmp.ne.s32.totalorder %s50, %s52
      %p59 = scmp.eq.s32.totalorder %s21, 1
      %p60 = por %p58, %p59
      %p61 = scmp.ne.s32.totalorder %s52, %s53
      %p62 = scmp.eq.s32.totalorder %s21, 0
      %p63 = por %p61, %p62
      %p64 = scmp.ne.s32.totalorder %s52, %s53
      %p65 = scmp.eq.s32.totalorder %s22, 1
      %p66 = por %p64, %p65
      %p68 = scmp.ne.s32.totalorder %s53, %s67
      %p69 = scmp.eq.s32.totalorder %s22, 0
      %p70 = por %p68, %p69
      %s72 = sadd.s32 %s71, 1
      %p75 = scmp.eq.s32.totalorder %s16, 1
      %p76 = scmp.ne.s32.totalorder %s71, %s73
      %p77 = scmp.eq.s32.totalorder %s16, 0
      %p78 = por %p76, %p77
      %p79 = scmp.ne.s32.totalorder %s71, %s73
      %p80 = scmp.eq.s32.totalorder %s21, 1
      %p81 = por %p79, %p80
      %p82 = scmp.ne.s32.totalorder %s73, %s74
      %p83 = scmp.eq.s32.totalorder %s21, 0
      %p84 = por %p82, %p83
      %p85 = scmp.ne.s32.totalorder %s73, %s74
      %p86 = scmp.eq.s32.totalorder %s22, 1
      %p87 = por %p85, %p86
      %p89 = scmp.ne.s32.totalorder %s74, %s88
      %p90 = scmp.eq.s32.totalorder %s22, 0
      %p91 = por %p89, %p90
      %s93 = sadd.s32 %s92, 1
      %p96 = scmp.eq.s32.totalorder %s16, 1
      %p97 = scmp.ne.s32.totalorder %s92, %s94
      %p98 = scmp.eq.s32.totalorder %s16, 0
      %p99 = por %p97, %p98
      %p100 = scmp.ne.s32.totalorder %s92, %s94
      %p101 = scmp.eq.s32.totalorder %s21, 1
      %p102 = por %p100, %p101
      %p103 = scmp.ne.s32.totalorder %s94, %s95
      %p104 = scmp.eq.s32.totalorder %s21, 0
      %p105 = por %p103, %p104
      %p106 = scmp.ne.s32.totalorder %s94, %s95
      %p107 = scmp.eq.s32.totalorder %s22, 1
      %p108 = por %p106, %p107
      %p110 = scmp.ne.s32.totalorder %s95, %s109
      %p111 = scmp.eq.s32.totalorder %s22, 0
      %p112 = por %p110, %p111
      %s114 = sadd.s32 %s113, 1
      %p117 = scmp.eq.s32.totalorder %s16, 1
      %p118 = scmp.ne.s32.totalorder %s113, %s115
      %p119 = scmp.eq.s32.totalorder %s16, 0
      %p120 = por %p118, %p119
      %p121 = scmp.ne.s32.totalorder %s113, %s115
      %p122 = scmp.eq.s32.totalorder %s21, 1
      %p123 = por %p121, %p122
      %p124 = scmp.ne.s32.totalorder %s115, %s116
      %p125 = scmp.eq.s32.totalorder %s21, 0
      %p126 = por %p124, %p125
      %p127 = scmp.ne.s32.totalorder %s115, %s116
      %p128 = scmp.eq.s32.totalorder %s22, 1
      %p129 = por %p127, %p128
      %p131 = scmp.ne.s32.totalorder %s116, %s130
      %p132 = scmp.eq.s32.totalorder %s22, 0
      %p133 = por %p131, %p132
      %s134 = ssub.s32 %s16, %s23
      %p135 = scmp.eq.s32.totalorder %s134, 0
      %s137 = sadd.s32 %s136, 1
      %s138 = scalar_select %p135, %s136, %s137
      %p141 = pneg %p135
      %p142 = scmp.eq.s32.totalorder %s16, 1
      %p143 = por %p141, %p142
      %p144 = scmp.ne.s32.totalorder %s136, %s139
      %p145 = scmp.eq.s32.totalorder %s16, 0
      %p146 = por %p144, %p145
      %p147 = scmp.ne.s32.totalorder %s136, %s139
      %p148 = scmp.eq.s32.totalorder %s21, 1
      %p149 = por %p147, %p148
      %p150 = scmp.ne.s32.totalorder %s139, %s140
      %p151 = scmp.eq.s32.totalorder %s21, 0
      %p152 = por %p150, %p151
      %p153 = scmp.ne.s32.totalorder %s139, %s140
      %p154 = scmp.eq.s32.totalorder %s22, 1
      %p155 = por %p153, %p154
      %p157 = scmp.ne.s32.totalorder %s140, %s156
      %p158 = scmp.eq.s32.totalorder %s22, 0
      %p159 = por %p157, %p158
      %p160 = scmp.le.s32.totalorder 1, %s16
      %p161 = scmp.lt.s32.totalorder %s16, 3
      %p162 = pnand %p160, %p161
      %p163 = pneg %p162
      // Predicated region
      $region9: #{tpu_custom_call.1} parent=5 // pred_check
        _
      $region10: #{tpu_custom_call.1} parent=5 // pred_check_branch
        %165 = sbr.rel (%p162) target = $region12
      $region11: #{tpu_custom_call.1} parent=5 // pred_region
        %s166 = ssub.s32 %s16, 1
        // Predicated region
        $region13: #{tpu_custom_call.1} parent=11 // pred_check
          %p167 = pneg %p63
        $region14: #{tpu_custom_call.1} parent=11 // pred_check_branch
          %169 = sbr.rel (%p167) target = $region16
        $region15: #{tpu_custom_call.1} parent=11 // pred_region
          _
        $region16: #{tpu_custom_call.1} parent=11 // pred_fallthru
          _
        // Predicated region
        $region17: #{tpu_custom_call.1} parent=11 // pred_check
          %p170 = pneg %p84
        $region18: #{tpu_custom_call.1} parent=11 // pred_check_branch
          %172 = sbr.rel (%p170) target = $region20
        $region19: #{tpu_custom_call.1} parent=11 // pred_region
          _
        $region20: #{tpu_custom_call.1} parent=11 // pred_fallthru
          _
        // Predicated region
        $region21: #{tpu_custom_call.1} parent=11 // pred_check
          %p173 = pneg %p105
        $region22: #{tpu_custom_call.1} parent=11 // pred_check_branch
          %175 = sbr.rel (%p173) target = $region24
        $region23: #{tpu_custom_call.1} parent=11 // pred_region
          _
        $region24: #{tpu_custom_call.1} parent=11 // pred_fallthru
          _
        // Predicated region
        $region25: #{tpu_custom_call.1} parent=11 // pred_check
          %p176 = pneg %p126
        $region26: #{tpu_custom_call.1} parent=11 // pred_check_branch
          %178 = sbr.rel (%p176) target = $region28
        $region27: #{tpu_custom_call.1} parent=11 // pred_region
          _
        $region28: #{tpu_custom_call.1} parent=11 // pred_fallthru
          _
      $region12: #{tpu_custom_call.1} parent=5 // pred_fallthru
        _
      %p179 = scmp.lt.s32.totalorder %s16, 2
      // Predicated region
      $region29: #{tpu_custom_call.1} parent=5 // pred_check
        %p180 = pneg %p179
      $region30: #{tpu_custom_call.1} parent=5 // pred_check_branch
        %182 = sbr.rel (%p180) target = $region32
      $region31: #{tpu_custom_call.1} parent=5 // pred_region
        // Predicated region
        $region33: #{tpu_custom_call.1} parent=31 // pred_check
          %p183 = pneg %p36
        $region34: #{tpu_custom_call.1} parent=31 // pred_check_branch
          %185 = sbr.rel (%p183) target = $region36
        $region35: #{tpu_custom_call.1} parent=31 // pred_region
          %s186 = sand.u32 %s26, 1
          %s187 = sand.u32 %s26, 1
          %s188 = smul.addr %s187, 16
          %s189 = scalar_lea.vmem [#allocation3], %s188
          %s190 = smul.addr %s16, 8
          %s191 = scalar_lea.vmem %s0, %s190
          // Predicated region
          $region37: #{tpu_custom_call.1} parent=35 // pred_check
            _
          $region38: #{tpu_custom_call.1} parent=35 // pred_check_branch
            %193 = sbr.rel (0) target = $region40
          $region39: #{tpu_custom_call.1} parent=35 // pred_region
            // Predicated region
            $region41: #{tpu_custom_call.1} parent=39 // pred_check
              _
            $region42: #{tpu_custom_call.1} parent=39 // pred_check_branch
              %195 = sbr.rel (0) target = $region44
            $region43: #{tpu_custom_call.1} parent=39 // pred_region
              // Predicated region
              $region56: #{tpu_custom_call.1} parent=43 // pred_check
                _
              $region57: #{tpu_custom_call.1} parent=43 // pred_check_branch
                %213 = sbr.rel (0) target = $region59
              $region58: #{tpu_custom_call.1} parent=43 // pred_region
                loop: start=0, step=1, limit=1
                $region60: #{tpu_custom_call.1} parent=58 // loop_pre_header
                  _
                $region61: #{tpu_custom_call.1} parent=58 // loop_header
                  %s215 = sphi 0, %s219
                  %p216 = scmp.ge.s32.totalorder %s215, 1
                  %s220 = sphi %s191, %s191
                  %s221 = sphi %s189, %s189
                $region62: #{tpu_custom_call.1} parent=58 // loop_header_branch
                  %218 = sbr.rel (%p216) target = $region66
                $region63: #{tpu_custom_call.1} parent=58 // loop_body
                  %v222 = vld [vmem:[%s220] sm:$0xff]
                  %223 = vst [vmem:[%s221] sm:$0xff] %v222
                  %v224 = vld [vmem:[%s220 + $0x10] sm:$0xff]
                  %225 = vst [vmem:[%s221 + $0x8] sm:$0xff] %v224
                $region64: #{tpu_custom_call.1} parent=58 // loop_footer
                  %s219 = sadd.s32 1, %s215
                $region65: #{tpu_custom_call.1} parent=58 // loop_footer_branch
                  %214 = sbr.rel target = $region61
                $region66: #{tpu_custom_call.1} parent=58 // loop_exit
                  _
              $region59: #{tpu_custom_call.1} parent=43 // pred_fallthru
                _
              // Predicated region
              $region67: #{tpu_custom_call.1} parent=43 // pred_check
                _
              $region68: #{tpu_custom_call.1} parent=43 // pred_check_branch
                %227 = sbr.rel target = $region70
              $region69: #{tpu_custom_call.1} parent=43 // pred_region
                _
              $region70: #{tpu_custom_call.1} parent=43 // pred_fallthru
                _
            $region44: #{tpu_custom_call.1} parent=39 // pred_fallthru
              _
            // Predicated region
            $region45: #{tpu_custom_call.1} parent=39 // pred_check
              _
            $region46: #{tpu_custom_call.1} parent=39 // pred_check_branch
              %197 = sbr.rel target = $region48
            $region47: #{tpu_custom_call.1} parent=39 // pred_region
              %s199 = ssub.s32 256, 1
              loop: start=0, step=1, limit=1
              $region49: #{tpu_custom_call.1} parent=47 // loop_pre_header
                _
              $region50: #{tpu_custom_call.1} parent=47 // loop_header
                %s201 = sphi 0, %s205
                %p202 = scmp.ge.s32.totalorder %s201, 1
                %s206 = sphi %s191, %s191
                %s207 = sphi %s189, %s189
              $region51: #{tpu_custom_call.1} parent=47 // loop_header_branch
                %204 = sbr.rel (%p202) target = $region55
              $region52: #{tpu_custom_call.1} parent=47 // loop_body
                %v208 = vld [vmem:[%s206] sm:%s199]
                %209 = vst [vmem:[%s207] sm:%s199] %v208
                %v210 = vld [vmem:[%s206 + $0x10] sm:%s199]
                %211 = vst [vmem:[%s207 + $0x8] sm:%s199] %v210
              $region53: #{tpu_custom_call.1} parent=47 // loop_footer
                %s205 = sadd.s32 1, %s201
              $region54: #{tpu_custom_call.1} parent=47 // loop_footer_branch
                %200 = sbr.rel target = $region50
              $region55: #{tpu_custom_call.1} parent=47 // loop_exit
                _
            $region48: #{tpu_custom_call.1} parent=39 // pred_fallthru
              _
          $region40: #{tpu_custom_call.1} parent=35 // pred_fallthru
            _
          %228 = vnop
        $region36: #{tpu_custom_call.1} parent=31 // pred_fallthru
          _
      $region32: #{tpu_custom_call.1} parent=5 // pred_fallthru
        _
      %p229 = scmp.le.s32.totalorder 1, %s16
      %p230 = scmp.lt.s32.totalorder %s16, 3
      %p231 = pnand %p229, %p230
      %p232 = pneg %p231
      // Predicated region
      $region71: #{tpu_custom_call.1} parent=5 // pred_check
        _
      $region72: #{tpu_custom_call.1} parent=5 // pred_check_branch
        %234 = sbr.rel (%p231) target = $region74
      $region73: #{tpu_custom_call.1} parent=5 // pred_region
        %s235 = ssub.s32 %s16, 1
        %s236 = sand.u32 %s29, 1
        %s237 = sand.u32 %s29, 1
        %s238 = smul.addr %s237, 16
        %s239 = scalar_lea.vmem [#allocation3], %s238
        // Predicated region
        $region75: #{tpu_custom_call.1} parent=73 // pred_check
          %p240 = pneg %p42
        $region76: #{tpu_custom_call.1} parent=73 // pred_check_branch
          %242 = sbr.rel (%p240) target = $region78
        $region77: #{tpu_custom_call.1} parent=73 // pred_region
          _
        $region78: #{tpu_custom_call.1} parent=73 // pred_fallthru
          _
        %s243 = sand.u32 %s29, 1
        %s244 = sand.u32 %s29, 1
        %s245 = smul.addr %s244, 16
        %s246 = scalar_lea.vmem [#allocation3], %s245
        %p247 = pneg %p42
        %p248 = pneg %p39
        %p249 = pneg %p63
        %p250 = pneg %p60
        %p251 = pneg %p84
        %p252 = pneg %p81
        %p253 = pneg %p105
        %p254 = pneg %p102
        %p255 = pneg %p126
        %p256 = pneg %p123
        %p257 = pneg %p152
        %p258 = pneg %p149
        %s259 = sand.u32 %s139, 1
        %s260 = scalar_lea.sflag [#allocation5], %s259
        %s261 = sand.u32 %s139, 1
        %s262 = scalar_lea.vmem [#allocation4], %s261
        %v263 = vld [vmem:[%s1] sm:$0xff]
        %v264 = vld [vmem:[%s1 + $0x8] sm:$0xff]
        %v265 = vld [vmem:[%s1 + $0x10] sm:$0xff]
        %v266 = vld [vmem:[%s1 + $0x18] sm:$0xff]
        %v267 = vld [vmem:[%s239] sm:$0xff]
        %v268 = vld [vmem:[%s239 + $0x8] sm:$0xff]
        %v269 = vld [vmem:[%s2] sm:$0xff]
        %v270 = vld [vmem:[%s2 + $0x8] sm:$0xff]
        %v271 = vld [vmem:[%s2 + $0x10] sm:$0xff]
        %v272 = vld [vmem:[%s2 + $0x18] sm:$0xff]
        %274 = vset.pattern.permute.xlu0 0
        %275 = vperm.xlu0 %274, %v269
        %v276 = vpop.permute.xlu0 %275
        %279 = vset.pattern.permute.xlu0 0
        %280 = vperm.xlu0 %279, %v270
        %v281 = vpop.permute.xlu0 %280
        %284 = vset.pattern.permute.xlu0 0
        %285 = vperm.xlu0 %284, %v271
        %v286 = vpop.permute.xlu0 %285
        %289 = vset.pattern.permute.xlu0 0
        %290 = vperm.xlu0 %289, %v272
        %v291 = vpop.permute.xlu0 %290
        %vm293 = vcmask 130048
        %v295 = vsel %vm293, %v263, 0
        %v298 = vsel %vm293, %v264, 0
        %v301 = vsel %vm293, %v265, 0
        %v304 = vsel %vm293, %v266, 0
        %306 = vmatpush.msra.mxu0 0.0
        %307 = vmatpush.msra.mxu0 0.0
        %308 = vmatpush.msra.mxu0 0.0
        %309 = vmatpush.msra.mxu0 0.0
        %310 = vmatpush.msra.mxu0 0.0
        %311 = vmatpush.msra.mxu0 0.0
        %312 = vmatpush.msra.mxu0 0.0
        %313 = vmatpush.msra.mxu0 0.0
        %314 = vmatpush.msra.mxu0 0.0
        %315 = vmatpush.msra.mxu0 0.0
        %316 = vmatpush.msra.mxu0 0.0
        %317 = vmatpush.msra.mxu0 0.0
        %318 = vmatpush.msra.mxu0 0.0
        %319 = vmatpush.msra.mxu0 0.0
        %320 = vmatpush.msra.mxu0 %v268
        %321 = vmatpush.msra.mxu0 %v267
        %322 = vmatmul.f32.gmra.mxu0 %v295
        %v323 = vpop.f32.mrf.mxu0
        %v324 = vadd.f32 %v276, %v323
        %325 = vmatmul.f32.gmra.mxu0 %v298
        %v326 = vpop.f32.mrf.mxu0
        %v327 = vadd.f32 %v281, %v326
        %328 = vmatmul.f32.gmra.mxu0 %v301
        %v329 = vpop.f32.mrf.mxu0
        %v330 = vadd.f32 %v286, %v329
        %331 = vmatmul.f32.gmra.mxu0 %v304
        %v332 = vpop.f32.mrf.mxu0
        %v333 = vadd.f32 %v291, %v332
        %334 = vdwg.mxu0
        %v335 = vsub.f32 0.0, %v324
        %v336 = vsub.f32 0.0, %v327
        %v337 = vsub.f32 0.0, %v330
        %v338 = vsub.f32 0.0, %v333
        %v339 = vmul.f32 %v335, 1.442695
        %v340 = vpow.pop %v339
        %v341 = vmul.f32 %v336, 1.442695
        %v342 = vpow.pop %v341
        %v343 = vmul.f32 %v337, 1.442695
        %v344 = vpow.pop %v343
        %v345 = vmul.f32 %v338, 1.442695
        %v346 = vpow.pop %v345
        %v347 = vadd.f32 %v340, 1.0
        %v348 = vadd.f32 %v342, 1.0
        %v349 = vadd.f32 %v344, 1.0
        %v350 = vadd.f32 %v346, 1.0
        %v351 = vrcp.pop %v347
        %v352 = vrcp.pop %v348
        %v353 = vrcp.pop %v349
        %v354 = vrcp.pop %v350
        %v355 = vld [vmem:[%s3] sm:$0xff]
        %v356 = vld [vmem:[%s3 + $0x8] sm:$0xff]
        %v357 = vld [vmem:[%s3 + $0x10] sm:$0xff]
        %v358 = vld [vmem:[%s3 + $0x18] sm:$0xff]
        %360 = vset.pattern.permute.xlu0 0
        %361 = vperm.xlu0 %360, %v355
        %v362 = vpop.permute.xlu0 %361
        %365 = vset.pattern.permute.xlu0 0
        %366 = vperm.xlu0 %365, %v356
        %v367 = vpop.permute.xlu0 %366
        %370 = vset.pattern.permute.xlu0 0
        %371 = vperm.xlu0 %370, %v357
        %v372 = vpop.permute.xlu0 %371
        %375 = vset.pattern.permute.xlu0 0
        %376 = vperm.xlu0 %375, %v358
        %v377 = vpop.permute.xlu0 %376
        %v379 = vmul.f32 %v351, %v362
        %v380 = vmul.f32 %v352, %v367
        %v381 = vmul.f32 %v353, %v372
        %v382 = vmul.f32 %v354, %v377
        %v383 = vadd.f32 %v379, %v380
        %v384 = vadd.f32 %v383, %v381
        %v385 = vadd.f32 %v384, %v382
        %v386 = vrot.slane %v385, 4
        %v387 = vadd.f32 %v385, %v386
        %v388 = vrot.slane %v387, 2
        %v389 = vadd.f32 %v387, %v388
        %v390 = vrot.slane %v389, 1
        %v391 = vadd.f32 %v389, %v390
        %v392 = vld [vmem:[#allocation2] sm:$0x1]
        %394 = vset.pattern.permute.xlu0 0
        %395 = vperm.xlu0 %394, %v392
        %v396 = vpop.permute.xlu0 %395
        %v398 = vperm.slane %v396, 0
        %v399 = vadd.f32 %v391, %v398
        %400 = vst [vmem:[%s262] sm:$0x1] %v399
        %s401 = sand.u32 %s139, 1
        %s402 = scalar_lea.sflag [#allocation5], %s401
        %s403 = sand.u32 %s139, 1
        %s404 = scalar_lea.vmem [#allocation4], %s403
        // Predicated region
        $region79: #{tpu_custom_call.1} parent=73 // pred_check
          %p405 = pneg %p149
        $region80: #{tpu_custom_call.1} parent=73 // pred_check_branch
          %407 = sbr.rel (%p405) target = $region82
        $region81: #{tpu_custom_call.1} parent=73 // pred_region
          %409 = vsyncadd %s402, 0
          %s410 = scalar_lea.hbm %s5, %s21
          %s412 = sshll.u32 %s404, 4
          %s413 = int_to_ptr.vmem [resolvable:$true] %s412
          %s414 = sshll.u32 %s410, 4
          %s415 = int_to_ptr.hbm [resolvable:$true] %s414
          %417 = dma.vmem_to_hbm [thread:$0]  %s413, 16, %s415, %s402
        $region82: #{tpu_custom_call.1} parent=73 // pred_fallthru
          _
      $region74: #{tpu_custom_call.1} parent=5 // pred_fallthru
        _
      %p418 = scmp.le.s32.totalorder 2, %s16
      // Predicated region
      $region83: #{tpu_custom_call.1} parent=5 // pred_check
        %p419 = pneg %p418
      $region84: #{tpu_custom_call.1} parent=5 // pred_check_branch
        %421 = sbr.rel (%p419) target = $region86
      $region85: #{tpu_custom_call.1} parent=5 // pred_region
        %s422 = ssub.s32 %s16, 2
        // Predicated region
        $region87: #{tpu_custom_call.1} parent=85 // pred_check
          %p423 = pneg %p155
        $region88: #{tpu_custom_call.1} parent=85 // pred_check_branch
          %425 = sbr.rel (%p423) target = $region90
        $region89: #{tpu_custom_call.1} parent=85 // pred_region
          %s426 = sand.u32 %s140, 1
          %s427 = scalar_lea.sflag [#allocation5], %s426
          %s428 = sand.u32 %s140, 1
          %s429 = scalar_lea.vmem [#allocation4], %s428
          %431 = dma.done %s427, 16
        $region90: #{tpu_custom_call.1} parent=85 // pred_fallthru
          _
      $region86: #{tpu_custom_call.1} parent=5 // pred_fallthru
        _
    $region6: #{tpu_custom_call.1} parent=1 // loop_footer
      %s20 = sadd.s32 1, %s16
    $region7: #{tpu_custom_call.1} parent=1 // loop_footer_branch
      %15 = sbr.rel target = $region3
    $region8: #{tpu_custom_call.1} parent=1 // loop_exit
      _
    %432 = vsyncpa [#allocation5], 1
    %s433 = scalar_lea.sflag [#allocation5], 1
    %434 = vsyncpa %s433, 1

</llo_original>
